<compile_context>
chip_gen: v6e
topology: v6e:2x2x1
jax: 0.10.0
libtpu: 0.0.40
codegen_flags: <defaults>
</compile_context>

<pallas_src>
import jax
import jax.numpy as jnp
from jax.experimental import pallas as pl
from jax.experimental.pallas import tpu as pltpu


def _round_up(x, m):
    return ((x + m - 1) // m) * m


def _vmem_capacity_bytes():
    """Per-TensorCore VMEM capacity; assume the smallest (v7x, 64 MiB) if unknown."""
    try:
        info = pltpu.get_tpu_info()
        cap = getattr(info, "vmem_capacity_bytes", None)
        if cap:
            return int(cap)
    except Exception:
        pass
    return 64 * 1024 * 1024


def _choose_tiles(n_rows, k_pad, e, in_item, out_item, cap_bytes):
    """Pick (tn, te, E_pad, footprint): MXU-aligned tiles under a
    generation-aware VMEM budget (~45% of physical, headroom for compiler
    scratch / semaphores / result staging)."""
    budget = int(cap_bytes * 0.45)

    # Embedding tile: keep the whole E resident whenever the weight fits a
    # fraction of the budget, so its index_map is constant and it is DMA'd
    # exactly once.  (te < E_pad would re-stream the weight every row tile.)
    e128 = _round_up(e, 128)
    if 2 * k_pad * e128 * in_item <= budget // 2:
        te = e128
    else:
        te = 128
        for cand in (1024, 512, 256):
            if cand < e128 and 2 * k_pad * cand * in_item <= budget // 2:
                te = cand
                break
    e_pad = _round_up(e128, te)

    def footprint(tn):
        return (2 * tn * k_pad * in_item      # patches tile, double buffered
                + 2 * k_pad * te * in_item    # weight (constant index, 2 bufs)
                + 2 * te * 4                  # f32 bias
                + 2 * tn * te * out_item      # output tile, double buffered
                + tn * te * 4)                # f32 MXU accumulator staging

    n_ceil = _round_up(max(n_rows, 1), 8)
    fitting = [c for c in (2048, 1024, 512, 256, 128, 64, 32, 16, 8)
               if c <= n_ceil and footprint(c) <= budget]
    if not fitting:
        fitting = [8]

    def score(c):
        divides = (n_rows % c == 0)              # no pad pass / no output slice
        multi_step = (-(-n_rows // c)) >= 2      # >=2 grid steps -> both v7x TCs busy
        return (divides, multi_step, c)

    tn = max(fitting, key=score)
    return tn, te, e_pad, footprint(tn)


def _patch_embed_kernel(p_ref, w_ref, b_ref, o_ref):
    # One (tn, K) x (K, te) tile matmul on the MXU, f32 accumulation, bias add.
    acc = jnp.dot(p_ref[...], w_ref[...], preferred_element_type=jnp.float32)
    o_ref[...] = (acc + b_ref[...]).astype(o_ref.dtype)


def patch_embed(x, weight, bias, patch_size, *, compute_dtype=None,
                out_dtype=None, allow_patch_fusion=True):
    """Pallas PatchEmbed forward.

    x      : (B, C, H, W)  NCHW, same as PyTorch input
    weight : (E, C, p, p)  Conv2d weight
    bias   : (E,)          Conv2d bias
    compute_dtype : matmul-input dtype (e.g. jnp.bfloat16; recommended on v5e).
                    Default keeps the input dtype so numerics match PyTorch.
    out_dtype     : output dtype (bf16 halves the dominant N*E HBM write).
    returns: (B, gh*gw, E)
    """
    B, C, H, W = x.shape
    p = patch_size
    gh, gw = H // p, W // p
    E = weight.shape[0]
    K = C * p * p
    N = B * gh * gw

    cdtype = jnp.dtype(compute_dtype) if compute_dtype is not None else jnp.dtype(x.dtype)
    odtype = jnp.dtype(out_dtype) if out_dtype is not None else jnp.dtype(x.dtype)

    cap = _vmem_capacity_bytes()
    K_pad = _round_up(K, 128)                 # lane-align the contraction dim
    tn, te, E_pad, footprint = _choose_tiles(
        N, K_pad, E, cdtype.itemsize, odtype.itemsize, cap)
    N_pad = _round_up(N, tn)

    # Cast before the rearrange so the (N, K) patches copy (if materialized at
    # all) is written at the narrower compute precision.
    x_c = x.astype(cdtype)
    w_c = weight.astype(cdtype)

    # Patch extraction: stride==kernel conv == non-overlapping patch gather.
    # N/K zero-padding is appended to the same producer chain; with
    # allow_input_fusion XLA may fuse cast+transpose+pad directly into the
    # Pallas input DMA, avoiding a separate materialized HBM pass.
    patches = (
        x_c.reshape(B, C, gh, p, gw, p)
        .transpose(0, 2, 4, 1, 3, 5)          # (B, gh, gw, C, p, p)
        .reshape(N, K)
    )
    if N_pad != N or K_pad != K:
        patches = jnp.pad(patches, ((0, N_pad - N), (0, K_pad - K)))

    w2 = w_c.reshape(E, K).T                  # (K, E)
    b2 = bias.astype(jnp.float32).reshape(1, E)
    if E_pad != E or K_pad != K:
        w2 = jnp.pad(w2, ((0, K_pad - K), (0, E_pad - E)))   # zero K/E pad -> exact
        b2 = jnp.pad(b2, ((0, 0), (0, E_pad - E)))

    grid = (N_pad // tn, E_pad // te)
    weight_fetches = 1 if te == E_pad else grid[0]

    cost = pl.CostEstimate(
        flops=2 * N_pad * K_pad * E_pad,
        transcendentals=0,
        bytes_accessed=(N_pad * K_pad * cdtype.itemsize
                        + weight_fetches * K_pad * E_pad * cdtype.itemsize
                        + E_pad * 4
                        + N_pad * E_pad * odtype.itemsize),
    )

    # Never below the default scoped limit, never above 75% of physical VMEM
    # (48 MiB on v7x -> headroom for compiler-internal scratch; larger on
    # v5e/v6e's 128 MiB).
    vmem_limit = min(int(cap * 0.75), max(32 << 20, 2 * footprint))

    # TODO(synk): if profiling shows exposed DMA on the patches stream, add
    # pipeline_mode=pl.Buffered(3) to in_specs[0] only (re-check v7x VMEM fit).
    out = pl.pallas_call(
        _patch_embed_kernel,
        out_shape=jax.ShapeDtypeStruct((N_pad, E_pad), odtype),
        grid=grid,
        in_specs=[
            pl.BlockSpec((tn, K_pad), lambda i, j: (i, 0)),   # patches row tile
            pl.BlockSpec((K_pad, te), lambda i, j: (0, j)),   # weight (once if te==E_pad)
            pl.BlockSpec((1, te), lambda i, j: (0, j)),       # bias tile
        ],
        out_specs=pl.BlockSpec((tn, te), lambda i, j: (i, j)),
        compiler_params=pltpu.CompilerParams(
            dimension_semantics=("parallel", "parallel"),
            vmem_limit_bytes=vmem_limit,
            allow_input_fusion=[bool(allow_patch_fusion), False, False],
        ),
        cost_estimate=cost,
    )(patches, w2, b2)

    if N_pad != N or E_pad != E:
        out = out[:N, :E]
    # norm_layer=None -> Identity; flatten=True -> (B, num_patches, E)
    return out.reshape(B, gh * gw, E)


def reference_patch_embed(x, weight, bias, patch_size):
    """Pure-JAX reference (conv via dot) for correctness check."""
    B, C, H, W = x.shape
    p = patch_size
    gh, gw = H // p, W // p
    E = weight.shape[0]
    patches = (
        x.reshape(B, C, gh, p, gw, p)
        .transpose(0, 2, 4, 1, 3, 5)
        .reshape(B * gh * gw, C * p * p)
    )
    out = patches @ weight.reshape(E, -1).T + bias[None, :]
    return out.reshape(B, gh * gw, E)


if __name__ == "__main__":
    # Small shapes consistent with the module: img_size=16, patch_size=8,
    # in_chans=4, embed_dim=32, batch=2  -> num_patches = 4.
    B, C, H, W = 2, 4, 16, 16
    patch_size = 8
    embed_dim = 32

    key = jax.random.PRNGKey(0)
    kx, kw, kb = jax.random.split(key, 3)
    x = jax.random.normal(kx, (B, C, H, W), dtype=jnp.float32)
    weight = (
        jax.random.normal(kw, (embed_dim, C, patch_size, patch_size), dtype=jnp.float32)
        * 0.02
    )
    bias = jax.random.normal(kb, (embed_dim,), dtype=jnp.float32) * 0.02

    # f32 path: matches the PyTorch module's numerics.
    y = patch_embed(x, weight, bias, patch_size)
    jax.block_until_ready(y)

    y_ref = reference_patch_embed(x, weight, bias, patch_size)
    assert y.shape == (B, (H // patch_size) * (W // patch_size), embed_dim)
    assert jnp.allclose(y, y_ref, atol=1e-5, rtol=1e-5)

    # bf16 compute + bf16 output path (production config; recommended default on
    # bandwidth-starved v5e): halves HBM traffic on both the patches read and
    # the output write; extraction itself runs at bf16 (looser tolerance).
    y_bf16 = patch_embed(x, weight, bias, patch_size,
                         compute_dtype=jnp.bfloat16, out_dtype=jnp.bfloat16)
    jax.block_until_ready(y_bf16)
    assert y_bf16.shape == y.shape
    assert jnp.allclose(y_bf16.astype(jnp.float32), y_ref, atol=5e-2, rtol=5e-2)

    print("KERNEL_OK")
</pallas_src>

<mosaic_0001>
module attributes {stable_mosaic.version = 11 : i64} {
  func.func @_patch_embed_kernel(%arg0: i32, %arg1: i32, %arg2: memref<8x256xf32, #tpu.memory_space<vmem>>, %arg3: memref<256x128xf32, #tpu.memory_space<vmem>>, %arg4: memref<1x128xf32, #tpu.memory_space<vmem>>, %arg5: memref<8x128xf32, #tpu.memory_space<vmem>>) attributes {dimension_semantics = [#tpu.dimension_semantics<parallel>, #tpu.dimension_semantics<parallel>], iteration_bounds = array<i64: 1, 1>, scalar_prefetch = 0 : i64, scratch_operands = 0 : i64, tpu.core_type = #tpu.core_type<tc>, window_params = [{transform_indices = @transform_0, window_bounds = array<i64: 8, 256>}, {transform_indices = @transform_1, window_bounds = array<i64: 256, 128>}, {transform_indices = @transform_2, window_bounds = array<i64: 1, 128>}, {transform_indices = @transform_3, window_bounds = array<i64: 8, 128>}]} {
    %c0 = arith.constant 0 : index
    %c0_0 = arith.constant 0 : index
    %0 = vector.load %arg2[%c0, %c0_0] : memref<8x256xf32, #tpu.memory_space<vmem>>, vector<8x256xf32>
    %c0_1 = arith.constant 0 : index
    %c0_2 = arith.constant 0 : index
    %1 = vector.load %arg3[%c0_1, %c0_2] : memref<256x128xf32, #tpu.memory_space<vmem>>, vector<256x128xf32>
    %cst = arith.constant dense<0.000000e+00> : vector<8x128xf32>
    %2 = tpu.matmul %0, %1, %cst {dimension_numbers = #tpu.dot_dimension_numbers<[1], [0], [0], [1], [0, 0, 1, 1], [], []>} : vector<8x256xf32>, vector<256x128xf32>, vector<8x128xf32> -> vector<8x128xf32>
    %c0_3 = arith.constant 0 : index
    %c0_4 = arith.constant 0 : index
    %3 = vector.load %arg4[%c0_3, %c0_4] : memref<1x128xf32, #tpu.memory_space<vmem>>, vector<1x128xf32>
    %4 = vector.broadcast %3 : vector<1x128xf32> to vector<8x128xf32>
    %5 = arith.addf %2, %4 : vector<8x128xf32>
    %c0_5 = arith.constant 0 : index
    %c0_6 = arith.constant 0 : index
    %6 = vector.load %arg5[%c0_5, %c0_6] : memref<8x128xf32, #tpu.memory_space<vmem>>, vector<8x128xf32>
    tpu.vector_store %arg5[%c0_5, %c0_6], %5 {strides = array<i32>} : memref<8x128xf32, #tpu.memory_space<vmem>>, vector<8x128xf32>,
    return
  }
  func.func @transform_0(%arg0: i32, %arg1: i32) -> (i32, i32) {
    %c0_i32 = arith.constant 0 : i32
    %c0_i32_0 = arith.constant 0 : i32
    return %arg0, %c0_i32 : i32, i32
  }
  func.func @transform_1(%arg0: i32, %arg1: i32) -> (i32, i32) {
    %c0_i32 = arith.constant 0 : i32
    %c0_i32_0 = arith.constant 0 : i32
    return %c0_i32, %arg1 : i32, i32
  }
  func.func @transform_2(%arg0: i32, %arg1: i32) -> (i32, i32) {
    %c0_i32 = arith.constant 0 : i32
    %c0_i32_0 = arith.constant 0 : i32
    return %c0_i32, %arg1 : i32, i32
  }
  func.func @transform_3(%arg0: i32, %arg1: i32) -> (i32, i32) {
    %c0_i32 = arith.constant 0 : i32
    return %arg0, %arg1 : i32, i32
  }
}

</mosaic_0001>

<llo_original>
// kernel: tpu_custom_call.1
$region0: #{tpu_custom_call.1}
  #allocation0 [shape = 'u32[]', space=smem, size = 0x4, offset = 0x4, fixed_abs, tag = 'smem constant byte address 0x4 - core index']
  #allocation1 [shape = 'u32[144,128]{1,0:T(1,128)}', space=vmem, size = 0x12000, scoped, tag = 'internal scratch']
  %s0 = inlined_call_operand.hbm [shape: f32[8,256], index: 0, kind: input, shape index: {}]
  %s1 = inlined_call_operand.hbm [shape: f32[256,128], index: 1, kind: input, shape index: {}]
  %s2 = inlined_call_operand.vmem [shape: f32[1,128], index: 2, kind: input, shape index: {}]
  %s3 = inlined_call_operand.hbm [shape: f32[8,128], index: 3, kind: output, shape index: {}]
  %s4 = sld [smem:[#allocation0]]
  $region30: #{tpu_custom_call.1} parent=0
    _
  %s6 = ssub.s32 1, %s4
  %s7 = scalar_select 0, %s6, %s4
  $region1: #{tpu_custom_call.1} parent=0
    #allocation2 [shape = 'u8[8192]{0}', space=vmem, size = 0x2000, scoped, tag = 'input window, operand 0, single buffered']
    #allocation3 [shape = 's32[1]{0}', space=sflag, size = 0x4, scoped, tag = 'scoped memory for tpu_custom_call.1']
    #allocation4 [shape = 's32[1]{0}', space=sflag, size = 0x4, scoped, tag = 'scoped memory for tpu_custom_call.1']
    #allocation5 [shape = 'u8[131072]{0}', space=vmem, size = 0x20000, scoped, tag = 'input window, operand 1, single buffered']
    #allocation6 [shape = 's32[1]{0}', space=sflag, size = 0x4, scoped, tag = 'scoped memory for tpu_custom_call.1']
    #allocation7 [shape = 'u8[4096]{0}', space=vmem, size = 0x1000, scoped, tag = 'output window, operand 0, single buffered']
    %8 = vsyncpa [#allocation3], 0
    %9 = vsyncpa [#allocation6], 0
    %10 = vsyncpa [#allocation4], 0
    // Predicated region
    $region2: #{tpu_custom_call.1} parent=1 // pred_check
      _
    $region3: #{tpu_custom_call.1} parent=1 // pred_check_branch
      %12 = sbr.rel (0) target = $region5
    $region4: #{tpu_custom_call.1} parent=1 // pred_region
      %s14 = ssub.s32 256, 256
      %15 = vsyncadd [#allocation3], %s14
      %s17 = sshll.u32 [#allocation2], 4
      %s18 = int_to_ptr.vmem [resolvable:$true] %s17
      %20 = dma.hbm_to_vmem [thread:$0]  %s0, 256, %s18, [#allocation3]
    $region5: #{tpu_custom_call.1} parent=1 // pred_fallthru
      _
    // Predicated region
    $region6: #{tpu_custom_call.1} parent=1 // pred_check
      _
    $region7: #{tpu_custom_call.1} parent=1 // pred_check_branch
      %22 = sbr.rel (0) target = $region9
    $region8: #{tpu_custom_call.1} parent=1 // pred_region
      %s24 = ssub.s32 4096, 4096
      %25 = vsyncadd [#allocation6], %s24
      %s26 = sshll.u32 [#allocation5], 4
      %s27 = int_to_ptr.vmem [resolvable:$true] %s26
      %32 = dma.hbm_to_vmem [thread:$0]  %s1, 4096, %s27, [#allocation6], 128, 128, 8
    $region9: #{tpu_custom_call.1} parent=1 // pred_fallthru
      _
    // Predicated region
    $region10: #{tpu_custom_call.1} parent=1 // pred_check
      _
    $region11: #{tpu_custom_call.1} parent=1 // pred_check_branch
      %34 = sbr.rel (0) target = $region13
    $region12: #{tpu_custom_call.1} parent=1 // pred_region
      _
    $region13: #{tpu_custom_call.1} parent=1 // pred_fallthru
      _
    // Predicated region
    $region14: #{tpu_custom_call.1} parent=1 // pred_check
      _
    $region15: #{tpu_custom_call.1} parent=1 // pred_check_branch
      %36 = sbr.rel (0) target = $region17
    $region16: #{tpu_custom_call.1} parent=1 // pred_region
      %37 = dma.done [#allocation3], 256
    $region17: #{tpu_custom_call.1} parent=1 // pred_fallthru
      _
    // Predicated region
    $region18: #{tpu_custom_call.1} parent=1 // pred_check
      _
    $region19: #{tpu_custom_call.1} parent=1 // pred_check_branch
      %39 = sbr.rel (0) target = $region21
    $region20: #{tpu_custom_call.1} parent=1 // pred_region
      %40 = dma.done [#allocation6], 4096
    $region21: #{tpu_custom_call.1} parent=1 // pred_fallthru
      _
    %v41 = vld [vmem:[#allocation2] sm:$0xff]
    %v42 = vld [vmem:[#allocation2 + $0x8] sm:$0xff]
    %v43 = vld [vmem:[#allocation5] sm:$0xff]
    %v44 = vld [vmem:[#allocation5 + $0x8] sm:$0xff]
    %v45 = vld [vmem:[#allocation5 + $0x10] sm:$0xff]
    %v46 = vld [vmem:[#allocation5 + $0x18] sm:$0xff]
    %v47 = vld [vmem:[#allocation5 + $0x20] sm:$0xff]
    %v48 = vld [vmem:[#allocation5 + $0x28] sm:$0xff]
    %v49 = vld [vmem:[#allocation5 + $0x30] sm:$0xff]
    %v50 = vld [vmem:[#allocation5 + $0x38] sm:$0xff]
    %v51 = vld [vmem:[#allocation5 + $0x40] sm:$0xff]
    %v52 = vld [vmem:[#allocation5 + $0x48] sm:$0xff]
    %v53 = vld [vmem:[#allocation5 + $0x50] sm:$0xff]
    %v54 = vld [vmem:[#allocation5 + $0x58] sm:$0xff]
    %v55 = vld [vmem:[#allocation5 + $0x60] sm:$0xff]
    %v56 = vld [vmem:[#allocation5 + $0x68] sm:$0xff]
    %v57 = vld [vmem:[#allocation5 + $0x70] sm:$0xff]
    %v58 = vld [vmem:[#allocation5 + $0x78] sm:$0xff]
    %v59 = vld [vmem:[#allocation5 + $0x80] sm:$0xff]
    %v60 = vld [vmem:[#allocation5 + $0x88] sm:$0xff]
    %v61 = vld [vmem:[#allocation5 + $0x90] sm:$0xff]
    %v62 = vld [vmem:[#allocation5 + $0x98] sm:$0xff]
    %v63 = vld [vmem:[#allocation5 + $0xa0] sm:$0xff]
    %v64 = vld [vmem:[#allocation5 + $0xa8] sm:$0xff]
    %v65 = vld [vmem:[#allocation5 + $0xb0] sm:$0xff]
    %v66 = vld [vmem:[#allocation5 + $0xb8] sm:$0xff]
    %v67 = vld [vmem:[#allocation5 + $0xc0] sm:$0xff]
    %v68 = vld [vmem:[#allocation5 + $0xc8] sm:$0xff]
    %v69 = vld [vmem:[#allocation5 + $0xd0] sm:$0xff]
    %v70 = vld [vmem:[#allocation5 + $0xd8] sm:$0xff]
    %v71 = vld [vmem:[#allocation5 + $0xe0] sm:$0xff]
    %v72 = vld [vmem:[#allocation5 + $0xe8] sm:$0xff]
    %v73 = vld [vmem:[#allocation5 + $0xf0] sm:$0xff]
    %v74 = vld [vmem:[#allocation5 + $0xf8] sm:$0xff]
    %v75 = vld [vmem:[%s2] sm:$0x1]
    %v77 = vlaneseq
    %v78 = vshrl.u32 %v77, 7
    %v79 = vsub.s32 0, %v78
    %v80 = vrot.slane %v75, %v79
    %82 = vmatprep.subr.mxu0 0.0
    %83 = vmatpush1.msra.mxu0 %v58
    %84 = vmatprep.subr.mxu0 0.0
    %85 = vmatpush1.msra.mxu0 %v57
    %86 = vmatprep.subr.mxu0 0.0
    %87 = vmatpush1.msra.mxu0 %v56
    %88 = vmatprep.subr.mxu0 0.0
    %89 = vmatpush1.msra.mxu0 %v55
    %90 = vmatprep.subr.mxu0 0.0
    %91 = vmatpush1.msra.mxu0 %v54
    %92 = vmatprep.subr.mxu0 0.0
    %93 = vmatpush1.msra.mxu0 %v53
    %94 = vmatprep.subr.mxu0 0.0
    %95 = vmatpush1.msra.mxu0 %v52
    %96 = vmatprep.subr.mxu0 0.0
    %97 = vmatpush1.msra.mxu0 %v51
    %98 = vmatprep.subr.mxu0 0.0
    %99 = vmatpush1.msra.mxu0 %v50
    %100 = vmatprep.subr.mxu0 0.0
    %101 = vmatpush1.msra.mxu0 %v49
    %102 = vmatprep.subr.mxu0 0.0
    %103 = vmatpush1.msra.mxu0 %v48
    %104 = vmatprep.subr.mxu0 0.0
    %105 = vmatpush1.msra.mxu0 %v47
    %106 = vmatprep.subr.mxu0 0.0
    %107 = vmatpush1.msra.mxu0 %v46
    %108 = vmatprep.subr.mxu0 0.0
    %109 = vmatpush1.msra.mxu0 %v45
    %110 = vmatprep.subr.mxu0 0.0
    %111 = vmatpush1.msra.mxu0 %v44
    %112 = vmatprep.subr.mxu0 0.0
    %113 = vmatpush1.msra.mxu0 %v43
    %114 = vmatprep.subr.mxu0 0.0
    %115 = vmatpush2.msra.mxu0 %v74
    %116 = vmatprep.subr.mxu0 0.0
    %117 = vmatpush2.msra.mxu0 %v73
    %118 = vmatprep.subr.mxu0 0.0
    %119 = vmatpush2.msra.mxu0 %v72
    %120 = vmatprep.subr.mxu0 0.0
    %121 = vmatpush2.msra.mxu0 %v71
    %122 = vmatprep.subr.mxu0 0.0
    %123 = vmatpush2.msra.mxu0 %v70
    %124 = vmatprep.subr.mxu0 0.0
    %125 = vmatpush2.msra.mxu0 %v69
    %126 = vmatprep.subr.mxu0 0.0
    %127 = vmatpush2.msra.mxu0 %v68
    %128 = vmatprep.subr.mxu0 0.0
    %129 = vmatpush2.msra.mxu0 %v67
    %130 = vmatprep.subr.mxu0 0.0
    %131 = vmatpush2.msra.mxu0 %v66
    %132 = vmatprep.subr.mxu0 0.0
    %133 = vmatpush2.msra.mxu0 %v65
    %134 = vmatprep.subr.mxu0 0.0
    %135 = vmatpush2.msra.mxu0 %v64
    %136 = vmatprep.subr.mxu0 0.0
    %137 = vmatpush2.msra.mxu0 %v63
    %138 = vmatprep.subr.mxu0 0.0
    %139 = vmatpush2.msra.mxu0 %v62
    %140 = vmatprep.subr.mxu0 0.0
    %141 = vmatpush2.msra.mxu0 %v61
    %142 = vmatprep.subr.mxu0 0.0
    %143 = vmatpush2.msra.mxu0 %v60
    %144 = vmatprep.subr.mxu0 0.0
    %145 = vmatpush2.msra.mxu0 %v59
    %146 = vmatprep.mubr.f32.mxu0 %v42
    %147 = vmatmul.mubr.f32.gmra.mxu0 %v41
    %v148 = vpop.f32.mrf.mxu0
    %v149 = vadd.f32 %v80, %v148
    %v150 = vpop.f32.mrf.mxu0
    %151 = vdwg.mxu0
    %152 = vst [vmem:[#allocation7] sm:$0xff] %v149
    // Predicated region
    $region22: #{tpu_custom_call.1} parent=1 // pred_check
      _
    $region23: #{tpu_custom_call.1} parent=1 // pred_check_branch
      %154 = sbr.rel (0) target = $region25
    $region24: #{tpu_custom_call.1} parent=1 // pred_region
      %s156 = ssub.s32 128, 128
      %157 = vsyncadd [#allocation4], %s156
      %s159 = sshll.u32 [#allocation7], 4
      %s160 = int_to_ptr.vmem [resolvable:$true] %s159
      %162 = dma.vmem_to_hbm [thread:$0]  %s160, 128, %s3, [#allocation4]
    $region25: #{tpu_custom_call.1} parent=1 // pred_fallthru
      _
    // Predicated region
    $region26: #{tpu_custom_call.1} parent=1 // pred_check
      _
    $region27: #{tpu_custom_call.1} parent=1 // pred_check_branch
      %164 = sbr.rel (0) target = $region29
    $region28: #{tpu_custom_call.1} parent=1 // pred_region
      %165 = dma.done [#allocation4], 128
    $region29: #{tpu_custom_call.1} parent=1 // pred_fallthru
      _
    %166 = vsyncpa [#allocation3], 1
    %167 = vsyncpa [#allocation6], 1
    %168 = vsyncpa [#allocation4], 1

</llo_original>
